<compile_context>
chip_gen: v7x
topology: tpu7x:2x2x1
jax: 0.10.0
libtpu: 0.0.40
codegen_flags: <defaults>
</compile_context>

<pallas_src>
import functools

import jax
import jax.numpy as jnp
from jax.experimental import pallas as pl
from jax.experimental.pallas import tpu as pltpu

IN_F = 6
HID = 21
OUT_F = 3


def _mlp_kernel(x_ref, w1_ref, b1_ref, w2_ref, b2_ref, w3_ref, b3_ref, o_ref):
    # x_ref: (IN_F, block_n) f32 — batch on lanes (dense), features on sublanes.
    x = x_ref[...]

    # fc1: (21,6) @ (6,bn) -> (21,bn).  Bias (21,1) broadcasts across lanes.
    h1 = jnp.dot(w1_ref[...], x, preferred_element_type=jnp.float32) + b1_ref[...]
    h1 = jnp.maximum(h1, 0.0)                                # relu(fc1)

    # fc2: (21,21) @ (21,bn) -> (21,bn)
    h2 = jnp.dot(w2_ref[...], h1, preferred_element_type=jnp.float32) + b2_ref[...]
    h2 = jnp.maximum(h2, 0.0)                                # relu(fc2)

    # fc3: (3,21) @ (21,bn) -> (3,bn)
    y = jnp.dot(w3_ref[...], h2, preferred_element_type=jnp.float32) + b3_ref[...]

    # Matches torch exactly: relu(exp(y) - 1).  exp goes to the EUP slot.
    o_ref[...] = jnp.maximum(jnp.exp(y) - 1.0, 0.0)


def _round_up(x, m):
    return ((x + m - 1) // m) * m


@functools.partial(jax.jit, static_argnames=("block_n",))
def mlp_forward(x, w1, b1, w2, b2, w3, b3, *, block_n=16384):
    """x: [N, 6] float32 (PyTorch-style batch-major). Returns [N, 3] float32.

    Weights are [out_f, in_f] (nn.Linear layout); biases are [out_f, 1].
    """
    n = x.shape[0]

    # Wrapper-side transpose to the lane-dense feature-major layout [IN_F, N].
    xt = x.T

    # Tile width: a multiple of 128 lanes, no larger than the padded batch.
    block = min(block_n, _round_up(n, 128))
    n_pad = _round_up(n, block)
    if n_pad != n:
        # Zero-pad extra batch columns; they compute exact zeros through the
        # whole network (bias=anything -> relu/exp chain stays finite) and are
        # sliced off below, so the fast path stays fully unmasked.
        xt = jnp.pad(xt, ((0, 0), (0, n_pad - n)))

    grid = (n_pad // block,)
    full = lambda i: (0, 0)  # weights / biases: one block = whole array

    out_t = pl.pallas_call(
        _mlp_kernel,
        out_shape=jax.ShapeDtypeStruct((OUT_F, n_pad), jnp.float32),
        grid_spec=pltpu.PrefetchScalarGridSpec(
            num_scalar_prefetch=0,
            grid=grid,
            in_specs=[
                pl.BlockSpec((IN_F, block), lambda i: (0, i)),  # x tile
                pl.BlockSpec((HID, IN_F), full),                # W1 (out,in)
                pl.BlockSpec((HID, 1), full),                   # b1
                pl.BlockSpec((HID, HID), full),                 # W2
                pl.BlockSpec((HID, 1), full),                   # b2
                pl.BlockSpec((OUT_F, HID), full),               # W3
                pl.BlockSpec((OUT_F, 1), full),                 # b3
            ],
            out_specs=pl.BlockSpec((OUT_F, block), lambda i: (0, i)),
        ),
        compiler_params=pltpu.CompilerParams(
            dimension_semantics=("parallel",),
            vmem_limit_bytes=32 * 1024 * 1024,
        ),
    )(xt, w1, b1, w2, b2, w3, b3)

    # Back to batch-major [N, 3].
    return out_t[:, :n].T


def init_params(key):
    """Deterministic init mirroring the PyTorch module:
    weights ~ U(-0.05, 0.05) stored as [out_f, in_f] (nn.Linear layout);
    biases zero, stored as [out_f, 1] columns."""
    k1, k2, k3 = jax.random.split(key, 3)
    w1 = jax.random.uniform(k1, (HID, IN_F), jnp.float32, -0.05, 0.05)
    w2 = jax.random.uniform(k2, (HID, HID), jnp.float32, -0.05, 0.05)
    w3 = jax.random.uniform(k3, (OUT_F, HID), jnp.float32, -0.05, 0.05)
    b1 = jnp.zeros((HID, 1), jnp.float32)
    b2 = jnp.zeros((HID, 1), jnp.float32)
    b3 = jnp.zeros((OUT_F, 1), jnp.float32)
    return w1, b1, w2, b2, w3, b3


def reference_forward(x, w1, b1, w2, b2, w3, b3):
    h1 = jnp.maximum(x @ w1.T + b1.T, 0.0)
    h2 = jnp.maximum(h1 @ w2.T + b2.T, 0.0)
    return jnp.maximum(jnp.exp(h2 @ w3.T + b3.T) - 1.0, 0.0)


if __name__ == "__main__":
    key = jax.random.PRNGKey(0)
    kx, kp = jax.random.split(key)

    # Small synthetic batch of BRDF samples (6 features each).  Batch is NOT a
    # multiple of 128 to exercise the pad-and-slice remainder path.
    batch = 200
    x = jax.random.uniform(kx, (batch, IN_F), jnp.float32, -1.0, 1.0)
    params = init_params(kp)

    out = mlp_forward(x, *params)
    out = jax.block_until_ready(out)

    ref = reference_forward(x, *params)
    assert out.shape == (batch, OUT_F)
    assert jnp.allclose(out, ref, atol=1e-5, rtol=1e-5)

    print("KERNEL_OK")
</pallas_src>

<mosaic_0001>
module attributes {stable_mosaic.version = 11 : i64} {
  func.func @_mlp_kernel(%arg0: i32, %arg1: memref<6x256xf32, #tpu.memory_space<vmem>>, %arg2: memref<21x6xf32, #tpu.memory_space<vmem>>, %arg3: memref<21x1xf32, #tpu.memory_space<vmem>>, %arg4: memref<21x21xf32, #tpu.memory_space<vmem>>, %arg5: memref<21x1xf32, #tpu.memory_space<vmem>>, %arg6: memref<3x21xf32, #tpu.memory_space<vmem>>, %arg7: memref<3x1xf32, #tpu.memory_space<vmem>>, %arg8: memref<3x256xf32, #tpu.memory_space<vmem>>) attributes {dimension_semantics = [#tpu.dimension_semantics<parallel>], iteration_bounds = array<i64: 1>, scalar_prefetch = 0 : i64, scratch_operands = 0 : i64, tpu.core_type = #tpu.core_type<tc>, window_params = [{transform_indices = @transform_0, window_bounds = array<i64: 6, 256>}, {pipeline_mode = #tpu.pipeline_mode<synchronous>, transform_indices = @transform_1, window_bounds = array<i64: 21, 6>}, {pipeline_mode = #tpu.pipeline_mode<synchronous>, transform_indices = @transform_2, window_bounds = array<i64: 21, 1>}, {pipeline_mode = #tpu.pipeline_mode<synchronous>, transform_indices = @transform_3, window_bounds = array<i64: 21, 21>}, {pipeline_mode = #tpu.pipeline_mode<synchronous>, transform_indices = @transform_4, window_bounds = array<i64: 21, 1>}, {pipeline_mode = #tpu.pipeline_mode<synchronous>, transform_indices = @transform_5, window_bounds = array<i64: 3, 21>}, {pipeline_mode = #tpu.pipeline_mode<synchronous>, transform_indices = @transform_6, window_bounds = array<i64: 3, 1>}, {transform_indices = @transform_7, window_bounds = array<i64: 3, 256>}]} {
    %c0 = arith.constant 0 : index
    %c0_0 = arith.constant 0 : index
    %0 = vector.load %arg1[%c0, %c0_0] : memref<6x256xf32, #tpu.memory_space<vmem>>, vector<6x256xf32>
    %c0_1 = arith.constant 0 : index
    %c0_2 = arith.constant 0 : index
    %1 = vector.load %arg2[%c0_1, %c0_2] : memref<21x6xf32, #tpu.memory_space<vmem>>, vector<21x6xf32>
    %cst = arith.constant dense<0.000000e+00> : vector<21x256xf32>
    %2 = tpu.matmul %1, %0, %cst {dimension_numbers = #tpu.dot_dimension_numbers<[1], [0], [0], [1], [0, 0, 1, 1], [], []>} : vector<21x6xf32>, vector<6x256xf32>, vector<21x256xf32> -> vector<21x256xf32>
    %c0_3 = arith.constant 0 : index
    %c0_4 = arith.constant 0 : index
    %3 = vector.load %arg3[%c0_3, %c0_4] : memref<21x1xf32, #tpu.memory_space<vmem>>, vector<21x1xf32>
    %4 = vector.broadcast %3 : vector<21x1xf32> to vector<21x256xf32>
    %5 = arith.addf %2, %4 : vector<21x256xf32>
    %cst_5 = arith.constant 0.000000e+00 : f32
    %6 = vector.broadcast %cst_5 : f32 to vector<21x256xf32>
    %7 = arith.maximumf %5, %6 : vector<21x256xf32>
    %c0_6 = arith.constant 0 : index
    %c0_7 = arith.constant 0 : index
    %8 = vector.load %arg4[%c0_6, %c0_7] : memref<21x21xf32, #tpu.memory_space<vmem>>, vector<21x21xf32>
    %cst_8 = arith.constant dense<0.000000e+00> : vector<21x256xf32>
    %9 = tpu.matmul %8, %7, %cst_8 {dimension_numbers = #tpu.dot_dimension_numbers<[1], [0], [0], [1], [0, 0, 1, 1], [], []>} : vector<21x21xf32>, vector<21x256xf32>, vector<21x256xf32> -> vector<21x256xf32>
    %c0_9 = arith.constant 0 : index
    %c0_10 = arith.constant 0 : index
    %10 = vector.load %arg5[%c0_9, %c0_10] : memref<21x1xf32, #tpu.memory_space<vmem>>, vector<21x1xf32>
    %11 = vector.broadcast %10 : vector<21x1xf32> to vector<21x256xf32>
    %12 = arith.addf %9, %11 : vector<21x256xf32>
    %cst_11 = arith.constant 0.000000e+00 : f32
    %13 = vector.broadcast %cst_11 : f32 to vector<21x256xf32>
    %14 = arith.maximumf %12, %13 : vector<21x256xf32>
    %c0_12 = arith.constant 0 : index
    %c0_13 = arith.constant 0 : index
    %15 = vector.load %arg6[%c0_12, %c0_13] : memref<3x21xf32, #tpu.memory_space<vmem>>, vector<3x21xf32>
    %cst_14 = arith.constant dense<0.000000e+00> : vector<3x256xf32>
    %16 = tpu.matmul %15, %14, %cst_14 {dimension_numbers = #tpu.dot_dimension_numbers<[1], [0], [0], [1], [0, 0, 1, 1], [], []>} : vector<3x21xf32>, vector<21x256xf32>, vector<3x256xf32> -> vector<3x256xf32>
    %c0_15 = arith.constant 0 : index
    %c0_16 = arith.constant 0 : index
    %17 = vector.load %arg7[%c0_15, %c0_16] : memref<3x1xf32, #tpu.memory_space<vmem>>, vector<3x1xf32>
    %18 = vector.broadcast %17 : vector<3x1xf32> to vector<3x256xf32>
    %19 = arith.addf %16, %18 : vector<3x256xf32>
    %20 = math.exp %19 : vector<3x256xf32>
    %cst_17 = arith.constant 1.000000e+00 : f32
    %21 = vector.broadcast %cst_17 : f32 to vector<3x256xf32>
    %22 = arith.subf %20, %21 : vector<3x256xf32>
    %cst_18 = arith.constant 0.000000e+00 : f32
    %23 = vector.broadcast %cst_18 : f32 to vector<3x256xf32>
    %24 = arith.maximumf %22, %23 : vector<3x256xf32>
    %c0_19 = arith.constant 0 : index
    %c0_20 = arith.constant 0 : index
    %25 = vector.load %arg8[%c0_19, %c0_20] : memref<3x256xf32, #tpu.memory_space<vmem>>, vector<3x256xf32>
    tpu.vector_store %arg8[%c0_19, %c0_20], %24 {strides = array<i32>} : memref<3x256xf32, #tpu.memory_space<vmem>>, vector<3x256xf32>,
    return
  }
  func.func @transform_0(%arg0: i32) -> (i32, i32) {
    %c0_i32 = arith.constant 0 : i32
    %c0_i32_0 = arith.constant 0 : i32
    return %c0_i32, %arg0 : i32, i32
  }
  func.func @transform_1(%arg0: i32) -> (i32, i32) {
    %c0_i32 = arith.constant 0 : i32
    %c0_i32_0 = arith.constant 0 : i32
    %c0_i32_1 = arith.constant 0 : i32
    return %c0_i32, %c0_i32_0 : i32, i32
  }
  func.func @transform_2(%arg0: i32) -> (i32, i32) {
    %c0_i32 = arith.constant 0 : i32
    %c0_i32_0 = arith.constant 0 : i32
    %c0_i32_1 = arith.constant 0 : i32
    return %c0_i32, %c0_i32_0 : i32, i32
  }
  func.func @transform_3(%arg0: i32) -> (i32, i32) {
    %c0_i32 = arith.constant 0 : i32
    %c0_i32_0 = arith.constant 0 : i32
    %c0_i32_1 = arith.constant 0 : i32
    return %c0_i32, %c0_i32_0 : i32, i32
  }
  func.func @transform_4(%arg0: i32) -> (i32, i32) {
    %c0_i32 = arith.constant 0 : i32
    %c0_i32_0 = arith.constant 0 : i32
    %c0_i32_1 = arith.constant 0 : i32
    return %c0_i32, %c0_i32_0 : i32, i32
  }
  func.func @transform_5(%arg0: i32) -> (i32, i32) {
    %c0_i32 = arith.constant 0 : i32
    %c0_i32_0 = arith.constant 0 : i32
    %c0_i32_1 = arith.constant 0 : i32
    return %c0_i32, %c0_i32_0 : i32, i32
  }
  func.func @transform_6(%arg0: i32) -> (i32, i32) {
    %c0_i32 = arith.constant 0 : i32
    %c0_i32_0 = arith.constant 0 : i32
    %c0_i32_1 = arith.constant 0 : i32
    return %c0_i32, %c0_i32_0 : i32, i32
  }
  func.func @transform_7(%arg0: i32) -> (i32, i32) {
    %c0_i32 = arith.constant 0 : i32
    %c0_i32_0 = arith.constant 0 : i32
    return %c0_i32, %arg0 : i32, i32
  }
}

</mosaic_0001>

<llo_original>
// kernel: mlp_forward.1
$region0: #{mlp_forward.1}
  #allocation0 [shape = 'u32[]', space=smem, size = 0x4, offset = 0x4, fixed_abs, tag = 'smem constant byte address 0x4 - core index']
  #allocation1 [shape = 'u32[144,128]{1,0:T(1,128)}', space=vmem, size = 0x12000, scoped, tag = 'internal scratch']
  %s0 = inlined_call_operand.vmem [shape: f32[6,256], index: 0, kind: input, shape index: {}]
  %s1 = inlined_call_operand.vmem [shape: f32[21,6], index: 1, kind: input, shape index: {}]
  %s2 = inlined_call_operand.vmem [shape: f32[21,1], index: 2, kind: input, shape index: {}]
  %s3 = inlined_call_operand.vmem [shape: f32[21,21], index: 3, kind: input, shape index: {}]
  %s4 = inlined_call_operand.vmem [shape: f32[21,1], index: 4, kind: input, shape index: {}]
  %s5 = inlined_call_operand.vmem [shape: f32[3,21], index: 5, kind: input, shape index: {}]
  %s6 = inlined_call_operand.vmem [shape: f32[3,1], index: 6, kind: input, shape index: {}]
  %s7 = inlined_call_operand.vmem [shape: f32[3,256], index: 7, kind: output, shape index: {}]
  %s8 = sld [smem:[#allocation0]]
  $region38: #{mlp_forward.1} parent=0
    _
  %s10 = ssub.s32 1, %s8
  %s11 = scalar_select 0, %s10, %s8
  // Predicated region
  $region2: #{mlp_forward.1} parent=0 // pred_check
    _
  $region3: #{mlp_forward.1} parent=0 // pred_check_branch
    %13 = sbr.rel (0) target = $region5
  $region4: #{mlp_forward.1} parent=0 // pred_region
    _
  $region5: #{mlp_forward.1} parent=0 // pred_fallthru
    _
  // Predicated region
  $region6: #{mlp_forward.1} parent=0 // pred_check
    _
  $region7: #{mlp_forward.1} parent=0 // pred_check_branch
    %15 = sbr.rel (0) target = $region9
  $region8: #{mlp_forward.1} parent=0 // pred_region
    _
  $region9: #{mlp_forward.1} parent=0 // pred_fallthru
    _
  // Predicated region
  $region10: #{mlp_forward.1} parent=0 // pred_check
    _
  $region11: #{mlp_forward.1} parent=0 // pred_check_branch
    %17 = sbr.rel (0) target = $region13
  $region12: #{mlp_forward.1} parent=0 // pred_region
    _
  $region13: #{mlp_forward.1} parent=0 // pred_fallthru
    _
  // Predicated region
  $region14: #{mlp_forward.1} parent=0 // pred_check
    _
  $region15: #{mlp_forward.1} parent=0 // pred_check_branch
    %19 = sbr.rel (0) target = $region17
  $region16: #{mlp_forward.1} parent=0 // pred_region
    _
  $region17: #{mlp_forward.1} parent=0 // pred_fallthru
    _
  // Predicated region
  $region18: #{mlp_forward.1} parent=0 // pred_check
    _
  $region19: #{mlp_forward.1} parent=0 // pred_check_branch
    %21 = sbr.rel (0) target = $region21
  $region20: #{mlp_forward.1} parent=0 // pred_region
    _
  $region21: #{mlp_forward.1} parent=0 // pred_fallthru
    _
  // Predicated region
  $region22: #{mlp_forward.1} parent=0 // pred_check
    _
  $region23: #{mlp_forward.1} parent=0 // pred_check_branch
    %23 = sbr.rel (0) target = $region25
  $region24: #{mlp_forward.1} parent=0 // pred_region
    _
  $region25: #{mlp_forward.1} parent=0 // pred_fallthru
    _
  // Predicated region
  $region26: #{mlp_forward.1} parent=0 // pred_check
    _
  $region27: #{mlp_forward.1} parent=0 // pred_check_branch
    %25 = sbr.rel (0) target = $region29
  $region28: #{mlp_forward.1} parent=0 // pred_region
    _
  $region29: #{mlp_forward.1} parent=0 // pred_fallthru
    _
  %v26 = vld [vmem:[%s0] sm:$0x3f]
  %v27 = vld [vmem:[%s0 + $0x8] sm:$0x3f]
  %v28 = vld [vmem:[%s1] sm:$0xff]
  %v29 = vld [vmem:[%s1 + $0x8] sm:$0xff]
  %v30 = vld [vmem:[%s1 + $0x10] sm:$0x1f]
  %v31 = vld [vmem:[%s2] sm:$0xff]
  %v32 = vld [vmem:[%s2 + $0x8] sm:$0xff]
  %v33 = vld [vmem:[%s2 + $0x10] sm:$0x1f]
  %35 = vset.pattern.permute.xlu0 0
  %36 = vperm.xlu0 %35, %v31
  %v37 = vpop.permute.xlu0 %36
  %40 = vset.pattern.permute.xlu0 0
  %41 = vperm.xlu0 %40, %v32
  %v42 = vpop.permute.xlu0 %41
  %45 = vset.pattern.permute.xlu0 0
  %46 = vperm.xlu0 %45, %v33
  %v47 = vpop.permute.xlu0 %46
  %vm49 = vcmask 48128
  %v51 = vsel %vm49, %v28, 0
  %v54 = vsel %vm49, %v29, 0
  %v57 = vsel %vm49, %v30, 0
  %vm59 = vcmask 1045504
  %v61 = vsel %vm59, %v26, 0
  %v64 = vsel %vm59, %v27, 0
  %66 = vmatprep.subr.mxu0 %v64
  %67 = vmatpush1.msra.mxu0 %v61
  %68 = vmatprep.subr.mxu0 0.0
  %69 = vmatpush1.msra.mxu0 0.0
  %70 = vmatprep.subr.mxu0 0.0
  %71 = vmatpush1.msra.mxu0 0.0
  %72 = vmatprep.subr.mxu0 0.0
  %73 = vmatpush1.msra.mxu0 0.0
  %74 = vmatprep.subr.mxu0 0.0
  %75 = vmatpush1.msra.mxu0 0.0
  %76 = vmatprep.subr.mxu0 0.0
  %77 = vmatpush1.msra.mxu0 0.0
  %78 = vmatprep.subr.mxu0 0.0
  %79 = vmatpush1.msra.mxu0 0.0
  %80 = vmatprep.subr.mxu0 0.0
  %81 = vmatpush1.msra.mxu0 0.0
  %82 = vmatprep.subr.mxu0 0.0
  %83 = vmatpush1.msra.mxu0 0.0
  %84 = vmatprep.subr.mxu0 0.0
  %85 = vmatpush1.msra.mxu0 0.0
  %86 = vmatprep.subr.mxu0 0.0
  %87 = vmatpush1.msra.mxu0 0.0
  %88 = vmatprep.subr.mxu0 0.0
  %89 = vmatpush1.msra.mxu0 0.0
  %90 = vmatprep.subr.mxu0 0.0
  %91 = vmatpush1.msra.mxu0 0.0
  %92 = vmatprep.subr.mxu0 0.0
  %93 = vmatpush1.msra.mxu0 0.0
  %94 = vmatprep.subr.mxu0 0.0
  %95 = vmatpush1.msra.mxu0 0.0
  %96 = vmatprep.subr.mxu0 0.0
  %97 = vmatpush1.msra.mxu0 0.0
  %98 = vmatprep.subr.mxu0 0.0
  %99 = vmatpush1.msra.mxu0 0.0
  %100 = vmatprep.subr.mxu0 0.0
  %101 = vmatpush1.msra.mxu0 0.0
  %102 = vmatprep.subr.mxu0 0.0
  %103 = vmatpush1.msra.mxu0 0.0
  %104 = vmatprep.subr.mxu0 0.0
  %105 = vmatpush1.msra.mxu0 0.0
  %106 = vmatprep.subr.mxu0 0.0
  %107 = vmatpush1.msra.mxu0 0.0
  %108 = vmatprep.subr.mxu0 0.0
  %109 = vmatpush1.msra.mxu0 0.0
  %110 = vmatprep.subr.mxu0 0.0
  %111 = vmatpush1.msra.mxu0 0.0
  %112 = vmatprep.subr.mxu0 0.0
  %113 = vmatpush1.msra.mxu0 0.0
  %114 = vmatprep.subr.mxu0 0.0
  %115 = vmatpush1.msra.mxu0 0.0
  %116 = vmatprep.subr.mxu0 0.0
  %117 = vmatpush1.msra.mxu0 0.0
  %118 = vmatprep.subr.mxu0 0.0
  %119 = vmatpush1.msra.mxu0 0.0
  %120 = vmatprep.subr.mxu0 0.0
  %121 = vmatpush1.msra.mxu0 0.0
  %122 = vmatprep.subr.mxu0 0.0
  %123 = vmatpush1.msra.mxu0 0.0
  %124 = vmatprep.subr.mxu0 0.0
  %125 = vmatpush1.msra.mxu0 0.0
  %126 = vmatprep.subr.mxu0 0.0
  %127 = vmatpush1.msra.mxu0 0.0
  %128 = vmatprep.subr.mxu0 0.0
  %129 = vmatpush1.msra.mxu0 0.0
  %130 = vmatprep.mubr.f32.mxu0 0.0
  %131 = vmatmul.mubr.f32.gmra.mrb[0].mxu0 %v51
  %v132 = vpop.f32.mrb[0].mxu0
  %v133 = vadd.f32 %v37, %v132
  %v134 = vpop.f32.mrb[0].mxu0
  %v135 = vadd.f32 %v37, %v134
  %136 = vmatprep.mubr.f32.mxu0 0.0
  %137 = vmatmul.mubr.f32.gmra.mrb[0].mxu0 %v54
  %v138 = vpop.f32.mrb[0].mxu0
  %v139 = vadd.f32 %v42, %v138
  %v140 = vpop.f32.mrb[0].mxu0
  %v141 = vadd.f32 %v42, %v140
  %142 = vmatprep.mubr.f32.mxu0 0.0
  %143 = vmatmul.mubr.f32.gmra.mrb[0].mxu0 %v57
  %v144 = vpop.f32.mrb[0].mxu0
  %v145 = vadd.f32 %v47, %v144
  %v146 = vpop.f32.mrb[0].mxu0
  %v147 = vadd.f32 %v47, %v146
  %148 = vdwg.mxu0
  %v149 = vmax.f32 %v133, 0.0
  %v150 = vmax.f32 %v135, 0.0
  %v151 = vmax.f32 %v139, 0.0
  %v152 = vmax.f32 %v141, 0.0
  %v153 = vmax.f32 %v145, 0.0
  %v154 = vmax.f32 %v147, 0.0
  %v155 = vld [vmem:[%s3] sm:$0xff]
  %v156 = vld [vmem:[%s3 + $0x8] sm:$0xff]
  %v157 = vld [vmem:[%s3 + $0x10] sm:$0x1f]
  %v158 = vld [vmem:[%s4] sm:$0xff]
  %v159 = vld [vmem:[%s4 + $0x8] sm:$0xff]
  %v160 = vld [vmem:[%s4 + $0x10] sm:$0x1f]
  %162 = vset.pattern.permute.xlu0 0
  %163 = vperm.xlu0 %162, %v158
  %v164 = vpop.permute.xlu0 %163
  %167 = vset.pattern.permute.xlu0 0
  %168 = vperm.xlu0 %167, %v159
  %v169 = vpop.permute.xlu0 %168
  %172 = vset.pattern.permute.xlu0 0
  %173 = vperm.xlu0 %172, %v160
  %v174 = vpop.permute.xlu0 %173
  %vm176 = vcmask 171008
  %v178 = vsel %vm176, %v155, 0
  %v181 = vsel %vm176, %v156, 0
  %v184 = vsel %vm176, %v157, 0
  %vm186 = vcmask 1044480
  %v188 = vsel %vm186, %v153, 0
  %v191 = vsel %vm186, %v154, 0
  %193 = vmatprep.subr.mxu0 %v150
  %194 = vmatpush1.msra.mxu0 %v149
  %195 = vmatprep.subr.mxu0 %v152
  %196 = vmatpush1.msra.mxu0 %v151
  %197 = vmatprep.subr.mxu0 %v191
  %198 = vmatpush1.msra.mxu0 %v188
  %199 = vmatprep.subr.mxu0 0.0
  %200 = vmatpush1.msra.mxu0 0.0
  %201 = vmatprep.subr.mxu0 0.0
  %202 = vmatpush1.msra.mxu0 0.0
  %203 = vmatprep.subr.mxu0 0.0
  %204 = vmatpush1.msra.mxu0 0.0
  %205 = vmatprep.subr.mxu0 0.0
  %206 = vmatpush1.msra.mxu0 0.0
  %207 = vmatprep.subr.mxu0 0.0
  %208 = vmatpush1.msra.mxu0 0.0
  %209 = vmatprep.subr.mxu0 0.0
  %210 = vmatpush1.msra.mxu0 0.0
  %211 = vmatprep.subr.mxu0 0.0
  %212 = vmatpush1.msra.mxu0 0.0
  %213 = vmatprep.subr.mxu0 0.0
  %214 = vmatpush1.msra.mxu0 0.0
  %215 = vmatprep.subr.mxu0 0.0
  %216 = vmatpush1.msra.mxu0 0.0
  %217 = vmatprep.subr.mxu0 0.0
  %218 = vmatpush1.msra.mxu0 0.0
  %219 = vmatprep.subr.mxu0 0.0
  %220 = vmatpush1.msra.mxu0 0.0
  %221 = vmatprep.subr.mxu0 0.0
  %222 = vmatpush1.msra.mxu0 0.0
  %223 = vmatprep.subr.mxu0 0.0
  %224 = vmatpush1.msra.mxu0 0.0
  %225 = vmatprep.subr.mxu0 0.0
  %226 = vmatpush1.msra.mxu0 0.0
  %227 = vmatprep.subr.mxu0 0.0
  %228 = vmatpush1.msra.mxu0 0.0
  %229 = vmatprep.subr.mxu0 0.0
  %230 = vmatpush1.msra.mxu0 0.0
  %231 = vmatprep.subr.mxu0 0.0
  %232 = vmatpush1.msra.mxu0 0.0
  %233 = vmatprep.subr.mxu0 0.0
  %234 = vmatpush1.msra.mxu0 0.0
  %235 = vmatprep.subr.mxu0 0.0
  %236 = vmatpush1.msra.mxu0 0.0
  %237 = vmatprep.subr.mxu0 0.0
  %238 = vmatpush1.msra.mxu0 0.0
  %239 = vmatprep.subr.mxu0 0.0
  %240 = vmatpush1.msra.mxu0 0.0
  %241 = vmatprep.subr.mxu0 0.0
  %242 = vmatpush1.msra.mxu0 0.0
  %243 = vmatprep.subr.mxu0 0.0
  %244 = vmatpush1.msra.mxu0 0.0
  %245 = vmatprep.subr.mxu0 0.0
  %246 = vmatpush1.msra.mxu0 0.0
  %247 = vmatprep.subr.mxu0 0.0
  %248 = vmatpush1.msra.mxu0 0.0
  %249 = vmatprep.subr.mxu0 0.0
  %250 = vmatpush1.msra.mxu0 0.0
  %251 = vmatprep.subr.mxu0 0.0
  %252 = vmatpush1.msra.mxu0 0.0
  %253 = vmatprep.subr.mxu0 0.0
  %254 = vmatpush1.msra.mxu0 0.0
  %255 = vmatprep.subr.mxu0 0.0
  %256 = vmatpush1.msra.mxu0 0.0
  %257 = vmatprep.mubr.f32.mxu0 0.0
  %258 = vmatmul.mubr.f32.gmra.mrb[0].mxu0 %v178
  %v259 = vpop.f32.mrb[0].mxu0
  %v260 = vadd.f32 %v164, %v259
  %v261 = vpop.f32.mrb[0].mxu0
  %v262 = vadd.f32 %v164, %v261
  %263 = vmatprep.mubr.f32.mxu0 0.0
  %264 = vmatmul.mubr.f32.gmra.mrb[0].mxu0 %v181
  %v265 = vpop.f32.mrb[0].mxu0
  %v266 = vadd.f32 %v169, %v265
  %v267 = vpop.f32.mrb[0].mxu0
  %v268 = vadd.f32 %v169, %v267
  %269 = vmatprep.mubr.f32.mxu0 0.0
  %270 = vmatmul.mubr.f32.gmra.mrb[0].mxu0 %v184
  %v271 = vpop.f32.mrb[0].mxu0
  %v272 = vadd.f32 %v174, %v271
  %v273 = vpop.f32.mrb[0].mxu0
  %v274 = vadd.f32 %v174, %v273
  %275 = vdwg.mxu0
  %v276 = vmax.f32 %v260, 0.0
  %v277 = vmax.f32 %v262, 0.0
  %v278 = vmax.f32 %v266, 0.0
  %v279 = vmax.f32 %v268, 0.0
  %v280 = vmax.f32 %v272, 0.0
  %v281 = vmax.f32 %v274, 0.0
  %v282 = vld [vmem:[%s5] sm:$0x7]
  %v283 = vld [vmem:[%s6] sm:$0x7]
  %285 = vset.pattern.permute.xlu0 0
  %286 = vperm.xlu0 %285, %v283
  %v287 = vpop.permute.xlu0 %286
  %v290 = vsel %vm176, %v282, 0
  %v293 = vsel %vm186, %v280, 0
  %v296 = vsel %vm186, %v281, 0
  %298 = vmatprep.subr.mxu0 %v277
  %299 = vmatpush1.msra.mxu0 %v276
  %300 = vmatprep.subr.mxu0 %v279
  %301 = vmatpush1.msra.mxu0 %v278
  %302 = vmatprep.subr.mxu0 %v296
  %303 = vmatpush1.msra.mxu0 %v293
  %304 = vmatprep.subr.mxu0 0.0
  %305 = vmatpush1.msra.mxu0 0.0
  %306 = vmatprep.subr.mxu0 0.0
  %307 = vmatpush1.msra.mxu0 0.0
  %308 = vmatprep.subr.mxu0 0.0
  %309 = vmatpush1.msra.mxu0 0.0
  %310 = vmatprep.subr.mxu0 0.0
  %311 = vmatpush1.msra.mxu0 0.0
  %312 = vmatprep.subr.mxu0 0.0
  %313 = vmatpush1.msra.mxu0 0.0
  %314 = vmatprep.subr.mxu0 0.0
  %315 = vmatpush1.msra.mxu0 0.0
  %316 = vmatprep.subr.mxu0 0.0
  %317 = vmatpush1.msra.mxu0 0.0
  %318 = vmatprep.subr.mxu0 0.0
  %319 = vmatpush1.msra.mxu0 0.0
  %320 = vmatprep.subr.mxu0 0.0
  %321 = vmatpush1.msra.mxu0 0.0
  %322 = vmatprep.subr.mxu0 0.0
  %323 = vmatpush1.msra.mxu0 0.0
  %324 = vmatprep.subr.mxu0 0.0
  %325 = vmatpush1.msra.mxu0 0.0
  %326 = vmatprep.subr.mxu0 0.0
  %327 = vmatpush1.msra.mxu0 0.0
  %328 = vmatprep.subr.mxu0 0.0
  %329 = vmatpush1.msra.mxu0 0.0
  %330 = vmatprep.subr.mxu0 0.0
  %331 = vmatpush1.msra.mxu0 0.0
  %332 = vmatprep.subr.mxu0 0.0
  %333 = vmatpush1.msra.mxu0 0.0
  %334 = vmatprep.subr.mxu0 0.0
  %335 = vmatpush1.msra.mxu0 0.0
  %336 = vmatprep.subr.mxu0 0.0
  %337 = vmatpush1.msra.mxu0 0.0
  %338 = vmatprep.subr.mxu0 0.0
  %339 = vmatpush1.msra.mxu0 0.0
  %340 = vmatprep.subr.mxu0 0.0
  %341 = vmatpush1.msra.mxu0 0.0
  %342 = vmatprep.subr.mxu0 0.0
  %343 = vmatpush1.msra.mxu0 0.0
  %344 = vmatprep.subr.mxu0 0.0
  %345 = vmatpush1.msra.mxu0 0.0
  %346 = vmatprep.subr.mxu0 0.0
  %347 = vmatpush1.msra.mxu0 0.0
  %348 = vmatprep.subr.mxu0 0.0
  %349 = vmatpush1.msra.mxu0 0.0
  %350 = vmatprep.subr.mxu0 0.0
  %351 = vmatpush1.msra.mxu0 0.0
  %352 = vmatprep.subr.mxu0 0.0
  %353 = vmatpush1.msra.mxu0 0.0
  %354 = vmatprep.subr.mxu0 0.0
  %355 = vmatpush1.msra.mxu0 0.0
  %356 = vmatprep.subr.mxu0 0.0
  %357 = vmatpush1.msra.mxu0 0.0
  %358 = vmatprep.subr.mxu0 0.0
  %359 = vmatpush1.msra.mxu0 0.0
  %360 = vmatprep.subr.mxu0 0.0
  %361 = vmatpush1.msra.mxu0 0.0
  %362 = vmatprep.mubr.f32.mxu0 0.0
  %363 = vmatmul.mubr.f32.gmra.mrb[0].mxu0 %v290
  %v364 = vpop.f32.mrb[0].mxu0
  %v365 = vadd.f32 %v287, %v364
  %v366 = vpop.f32.mrb[0].mxu0
  %v367 = vadd.f32 %v287, %v366
  %368 = vdwg.mxu0
  %v369 = vmul.f32 %v365, 1.442695
  %v370 = vpow.pop %v369
  %v371 = vmul.f32 %v367, 1.442695
  %v372 = vpow.pop %v371
  %v373 = vsub.f32 %v370, 1.0
  %v374 = vsub.f32 %v372, 1.0
  %v375 = vmax.f32 %v373, 0.0
  %v376 = vmax.f32 %v374, 0.0
  %v379 = vcombine.low %v375, %v376
  %381 = vst [vmem:[%s7] sm:$0x77] %v379
  // Predicated region
  $region30: #{mlp_forward.1} parent=0 // pred_check
    _
  $region31: #{mlp_forward.1} parent=0 // pred_check_branch
    %383 = sbr.rel (0) target = $region33
  $region32: #{mlp_forward.1} parent=0 // pred_region
    _
  $region33: #{mlp_forward.1} parent=0 // pred_fallthru
    _
  // Predicated region
  $region34: #{mlp_forward.1} parent=0 // pred_check
    _
  $region35: #{mlp_forward.1} parent=0 // pred_check_branch
    %385 = sbr.rel (0) target = $region37
  $region36: #{mlp_forward.1} parent=0 // pred_region
    _
  $region37: #{mlp_forward.1} parent=0 // pred_fallthru
    _

</llo_original>
